<compile_context>
chip_gen: v6e
topology: v6e:2x2x1
jax: 0.10.0
libtpu: 0.0.40
codegen_flags: <defaults>
</compile_context>

<pallas_src>
import functools

import jax
import jax.numpy as jnp
from jax.experimental import pallas as pl
from jax.experimental.pallas import tpu as pltpu


def _round_up(x: int, m: int) -> int:
    return (x + m - 1) // m * m


def _pick_tile(dim: int, max_tile: int, align: int) -> int:
    """Tile for a dim we pad ourselves: aligned, <= max_tile, low zero-padding waste."""
    dim_a = _round_up(dim, align)
    if dim_a <= max_tile:
        return dim_a
    cands = []
    t = max_tile
    while t >= align:
        cands.append(t)
        t //= 2
    waste_cap = max(align, dim_a // 8)
    for t in cands:  # largest tile whose tail-tile waste is acceptable
        if _round_up(dim_a, t) - dim_a <= waste_cap:
            return t
    return min(cands, key=lambda c: _round_up(dim_a, c) - dim_a)


def _largest_dividing_tile(dim: int, max_tile: int, align: int) -> int:
    """Largest multiple of `align` that divides `dim` (dim is a multiple of align)."""
    t = min(max_tile, dim)
    t -= t % align
    while t > align and dim % t:
        t -= align
    return t


# --------------------------------- kernels ---------------------------------


def expert_fused_kernel(x_ref, w_ref, b_ref, o_ref):
    # Whole (padded) reduction dim in one MXU pass: dot + bias + ReLU, single store.
    acc = jnp.dot(x_ref[...], w_ref[...], preferred_element_type=jnp.float32)
    acc = acc + b_ref[...].astype(jnp.float32)
    o_ref[...] = jnp.maximum(acc, 0.0).astype(o_ref.dtype)


def expert_ktiled_kernel(x_ref, w_ref, b_ref, o_ref, acc_ref):
    # Fallback for very large input_dim: accumulate over the last ("arbitrary") grid axis.
    k = pl.program_id(2)

    @pl.when(k == 0)
    def _init():
        acc_ref[...] = jnp.zeros_like(acc_ref)

    acc_ref[...] += jnp.dot(x_ref[...], w_ref[...], preferred_element_type=jnp.float32)

    @pl.when(k == pl.num_programs(2) - 1)
    def _finalize():
        acc = acc_ref[...] + b_ref[...].astype(jnp.float32)
        o_ref[...] = jnp.maximum(acc, 0.0).astype(o_ref.dtype)


# ------------------------------ parameter prep ------------------------------


def prepare_expert_params(weight, bias, compute_dtype=jnp.float32):
    """One-time parameter layout, OFF the per-call hot path.

    weight: (expert_dim, input_dim) as in torch.nn.Linear; bias: (expert_dim,).
    Returns (w_p, b_p): weight transposed to (input_dim, expert_dim), zero-padded to
    multiples of 128 on both dims, cast to the matmul compute dtype (bf16 recommended on
    v6e/v7x), plus the f32 bias padded to (1, N_pad).
    """
    expert_dim, input_dim = weight.shape
    k_pad = _round_up(input_dim, 128)
    n_pad = _round_up(expert_dim, 128)
    w_t = jnp.asarray(weight, compute_dtype).T
    w_p = jnp.zeros((k_pad, n_pad), compute_dtype).at[:input_dim, :expert_dim].set(w_t)
    b_p = jnp.zeros((1, n_pad), jnp.float32).at[0, :expert_dim].set(
        jnp.asarray(bias, jnp.float32))
    return w_p, b_p


# --------------------------------- forward ---------------------------------


@functools.partial(jax.jit, static_argnames=("expert_dim", "vmem_budget_bytes"))
def expert_forward(x, w_p, b_p, *, expert_dim, vmem_budget_bytes=24 * 1024 * 1024):
    """ReLU(x @ W^T + b) for one MMoE expert.

    x:   (B, input_dim) activations.
    w_p: (K_pad, N_pad) pre-transposed/padded/cast weight (from prepare_expert_params).
    b_p: (1, N_pad)     pre-padded f32 bias.
    """
    B, D_in = x.shape
    K_pad, N_pad = w_p.shape
    assert D_in <= K_pad and b_p.shape == (1, N_pad)

    cdtype = w_p.dtype
    itemsize = jnp.dtype(cdtype).itemsize
    out_dtype = x.dtype
    out_isize = jnp.dtype(out_dtype).itemsize
    sub = {4: 8, 2: 16, 1: 32}[itemsize]          # sublane packing for the compute dtype
    budget = vmem_budget_bytes

    # ------------------- tile / path selection (trace-time Python) -------------------
    tm = _pick_tile(B, 512, sub)
    M_pad = _round_up(B, tm)
    # Give the v7x megacore >=2 blocks along the "parallel" batch axis when batch allows.
    while M_pad // tm < 2 and tm >= 128 and tm % (2 * sub) == 0:
        tm //= 2
        M_pad = _round_up(B, tm)

    path = None
    tn, tk = N_pad, K_pad

    def ws_resident(tm_):  # whole weight resident, fused K
        return (2 * itemsize * (tm_ * K_pad + K_pad * N_pad + N_pad)
                + 2 * out_isize * tm_ * N_pad)

    if 2 * itemsize * K_pad * N_pad <= budget // 2:
        tm_a = tm
        while tm_a > sub and ws_resident(tm_a) > budget:
            tm_a = max(sub, _round_up(tm_a // 2, sub))
        if ws_resident(tm_a) <= budget:
            path, tm = "resident", tm_a
            M_pad = _round_up(B, tm)

    if path is None:
        def ws_fused(tm_, tn_):  # N tiled, fused K
            return (2 * itemsize * (tm_ * K_pad + K_pad * tn_ + tn_)
                    + 2 * out_isize * tm_ * tn_)

        tm_b = tm
        tn_b = _largest_dividing_tile(N_pad, 512, 128)
        while ws_fused(tm_b, tn_b) > budget and (tm_b > sub or tn_b > 128):
            if tn_b >= tm_b and tn_b > 128:
                tn_b = _largest_dividing_tile(N_pad, max(128, tn_b // 2), 128)
            elif tm_b > sub:
                tm_b = max(sub, _round_up(tm_b // 2, sub))
            else:
                break
        if ws_fused(tm_b, tn_b) <= budget:
            path, tm, tn = "fused2d", tm_b, tn_b
            M_pad = _round_up(B, tm)

    if path is None:
        # Very large input_dim: tile K and accumulate in an f32 VMEM scratch.
        def ws_ktiled(tm_, tn_, tk_):
            return (2 * itemsize * (tm_ * tk_ + tk_ * tn_ + tn_)
                    + 2 * out_isize * tm_ * tn_ + 4 * tm_ * tn_)

        tn = _largest_dividing_tile(N_pad, 512, 128)
        tk = _largest_dividing_tile(K_pad, 512, 128)
        while ws_ktiled(tm, tn, tk) > budget and (tm > sub or tn > 128 or tk > 128):
            if tk >= max(tm, tn) and tk > 128:
                tk = _largest_dividing_tile(K_pad, max(128, tk // 2), 128)
            elif tn >= tm and tn > 128:
                tn = _largest_dividing_tile(N_pad, max(128, tn // 2), 128)
            elif tm > sub:
                tm = max(sub, _round_up(tm // 2, sub))
            else:
                break
        M_pad = _round_up(B, tm)
        path = "ktiled"

    # Only x is padded (and cast) per call; zero padding is exact for matmul+bias+ReLU.
    x_p = jnp.pad(x.astype(cdtype), ((0, M_pad - B), (0, K_pad - D_in)))

    cost = pl.CostEstimate(
        flops=2 * M_pad * N_pad * K_pad,
        transcendentals=0,
        bytes_accessed=(itemsize * (M_pad * K_pad + K_pad * N_pad)
                        + 4 * N_pad + out_isize * M_pad * N_pad),
    )
    # Scoped-VMEM request: working set + compiler scratch, well under v7x's 64 MiB/TC.
    vmem_limit = min(max(budget + budget // 3, 32 * 1024 * 1024), 48 * 1024 * 1024)

    if path == "resident":
        kernel = expert_fused_kernel
        grid = (M_pad // tm,)
        in_specs = [
            pl.BlockSpec((tm, K_pad), lambda i: (i, 0)),
            pl.BlockSpec((K_pad, N_pad), lambda i: (0, 0)),   # whole weight, DMA'd once
            pl.BlockSpec((1, N_pad), lambda i: (0, 0)),       # whole bias, DMA'd once
        ]
        out_specs = pl.BlockSpec((tm, N_pad), lambda i: (i, 0))
        scratch = ()
        dims = ("parallel",)
    elif path == "fused2d":
        kernel = expert_fused_kernel
        x_bytes = M_pad * K_pad * itemsize
        w_bytes = K_pad * N_pad * itemsize
        if x_bytes >= w_bytes:
            # x stationary: i outer / j inner -> each x row-block is DMA'd exactly once.
            grid = (M_pad // tm, N_pad // tn)
            in_specs = [
                pl.BlockSpec((tm, K_pad), lambda i, j: (i, 0)),
                pl.BlockSpec((K_pad, tn), lambda i, j: (0, j)),
                pl.BlockSpec((1, tn), lambda i, j: (0, j)),
            ]
            out_specs = pl.BlockSpec((tm, tn), lambda i, j: (i, j))
        else:
            # weight stationary: j outer / i inner -> each weight col-block DMA'd once.
            grid = (N_pad // tn, M_pad // tm)
            in_specs = [
                pl.BlockSpec((tm, K_pad), lambda j, i: (i, 0)),
                pl.BlockSpec((K_pad, tn), lambda j, i: (0, j)),
                pl.BlockSpec((1, tn), lambda j, i: (0, j)),
            ]
            out_specs = pl.BlockSpec((tm, tn), lambda j, i: (i, j))
        scratch = ()
        dims = ("parallel", "parallel")
    else:  # "ktiled" fallback
        kernel = expert_ktiled_kernel
        grid = (M_pad // tm, N_pad // tn, K_pad // tk)
        in_specs = [
            pl.BlockSpec((tm, tk), lambda i, j, k: (i, k)),
            pl.BlockSpec((tk, tn), lambda i, j, k: (k, j)),
            pl.BlockSpec((1, tn), lambda i, j, k: (0, j)),
        ]
        out_specs = pl.BlockSpec((tm, tn), lambda i, j, k: (i, j))
        scratch = (pltpu.VMEM((tm, tn), jnp.float32),)
        dims = ("parallel", "parallel", "arbitrary")

    out = pl.pallas_call(
        kernel,
        out_shape=jax.ShapeDtypeStruct((M_pad, N_pad), out_dtype),
        grid_spec=pltpu.PrefetchScalarGridSpec(
            num_scalar_prefetch=0,
            grid=grid,
            in_specs=in_specs,
            out_specs=out_specs,
            scratch_shapes=scratch,
        ),
        compiler_params=pltpu.CompilerParams(
            dimension_semantics=dims,
            vmem_limit_bytes=vmem_limit,
        ),
        cost_estimate=cost,
    )(x_p, w_p, b_p)

    return out[:B, :expert_dim]


if __name__ == "__main__":
    # Small shapes consistent with the module: batch=8, input_dim=32, expert_dim=16.
    B, D_in, D_exp = 8, 32, 16
    key = jax.random.PRNGKey(0)
    kx, kw, kb = jax.random.split(key, 3)
    x = jax.random.normal(kx, (B, D_in), dtype=jnp.float32)
    bound = 1.0 / (D_in ** 0.5)  # mimic nn.Linear's uniform init
    weight = jax.random.uniform(kw, (D_exp, D_in), minval=-bound, maxval=bound,
                                dtype=jnp.float32)
    bias = jax.random.uniform(kb, (D_exp,), minval=-bound, maxval=bound,
                              dtype=jnp.float32)

    w_p, b_p = prepare_expert_params(weight, bias)            # one-time layout, f32
    y = expert_forward(x, w_p, b_p, expert_dim=D_exp)
    jax.block_until_ready(y)
    y_ref = jnp.maximum(x @ weight.T + bias, 0.0)
    assert y.shape == (B, D_exp)
    assert jnp.allclose(y, y_ref, atol=1e-5, rtol=1e-5)

    # Larger shape: >=2 parallel batch blocks, weight fully VMEM-resident, fused K.
    B2, D_in2, D_exp2 = 512, 512, 256
    k2x, k2w, k2b = jax.random.split(jax.random.PRNGKey(1), 3)
    x2 = jax.random.normal(k2x, (B2, D_in2), dtype=jnp.float32)
    w2 = jax.random.normal(k2w, (D_exp2, D_in2), dtype=jnp.float32) * 0.02
    b2 = jax.random.normal(k2b, (D_exp2,), dtype=jnp.float32) * 0.02
    w2_p, b2_p = prepare_expert_params(w2, b2)
    y2 = expert_forward(x2, w2_p, b2_p, expert_dim=D_exp2)
    jax.block_until_ready(y2)
    y2_ref = jnp.maximum(x2 @ w2.T + b2, 0.0)
    assert jnp.allclose(y2, y2_ref, atol=1e-4, rtol=1e-4)

    # bf16 compute path (recommended on v6e/v7x): halves HBM bytes; f32 accumulate/epilogue.
    w2_bf, b2_bf = prepare_expert_params(w2, b2, compute_dtype=jnp.bfloat16)
    y2_bf = expert_forward(x2, w2_bf, b2_bf, expert_dim=D_exp2)
    jax.block_until_ready(y2_bf)
    assert jnp.allclose(y2_bf, y2_ref, atol=3e-2, rtol=3e-2)

    # Tiny VMEM budget forces the K-tiled accumulator fallback; exercises it end to end.
    y2_kt = expert_forward(x2, w2_p, b2_p, expert_dim=D_exp2,
                           vmem_budget_bytes=256 * 1024)
    jax.block_until_ready(y2_kt)
    assert jnp.allclose(y2_kt, y2_ref, atol=1e-4, rtol=1e-4)

    print("KERNEL_OK")
</pallas_src>

<mosaic_0001>
module attributes {stable_mosaic.version = 11 : i64} {
  func.func @expert_fused_kernel(%arg0: i32, %arg1: memref<8x128xf32, #tpu.memory_space<vmem>>, %arg2: memref<128x128xf32, #tpu.memory_space<vmem>>, %arg3: memref<1x128xf32, #tpu.memory_space<vmem>>, %arg4: memref<8x128xf32, #tpu.memory_space<vmem>>) attributes {dimension_semantics = [#tpu.dimension_semantics<parallel>], iteration_bounds = array<i64: 1>, scalar_prefetch = 0 : i64, scratch_operands = 0 : i64, tpu.core_type = #tpu.core_type<tc>, window_params = [{transform_indices = @transform_0, window_bounds = array<i64: 8, 128>}, {pipeline_mode = #tpu.pipeline_mode<synchronous>, transform_indices = @transform_1, window_bounds = array<i64: 128, 128>}, {pipeline_mode = #tpu.pipeline_mode<synchronous>, transform_indices = @transform_2, window_bounds = array<i64: 1, 128>}, {transform_indices = @transform_3, window_bounds = array<i64: 8, 128>}]} {
    %c0 = arith.constant 0 : index
    %c0_0 = arith.constant 0 : index
    %0 = vector.load %arg1[%c0, %c0_0] : memref<8x128xf32, #tpu.memory_space<vmem>>, vector<8x128xf32>
    %c0_1 = arith.constant 0 : index
    %c0_2 = arith.constant 0 : index
    %1 = vector.load %arg2[%c0_1, %c0_2] : memref<128x128xf32, #tpu.memory_space<vmem>>, vector<128x128xf32>
    %cst = arith.constant dense<0.000000e+00> : vector<8x128xf32>
    %2 = tpu.matmul %0, %1, %cst {dimension_numbers = #tpu.dot_dimension_numbers<[1], [0], [0], [1], [0, 0, 1, 1], [], []>} : vector<8x128xf32>, vector<128x128xf32>, vector<8x128xf32> -> vector<8x128xf32>
    %c0_3 = arith.constant 0 : index
    %c0_4 = arith.constant 0 : index
    %3 = vector.load %arg3[%c0_3, %c0_4] : memref<1x128xf32, #tpu.memory_space<vmem>>, vector<1x128xf32>
    %4 = vector.broadcast %3 : vector<1x128xf32> to vector<8x128xf32>
    %5 = arith.addf %2, %4 : vector<8x128xf32>
    %cst_5 = arith.constant 0.000000e+00 : f32
    %6 = vector.broadcast %cst_5 : f32 to vector<8x128xf32>
    %7 = arith.maximumf %5, %6 : vector<8x128xf32>
    %c0_6 = arith.constant 0 : index
    %c0_7 = arith.constant 0 : index
    %8 = vector.load %arg4[%c0_6, %c0_7] : memref<8x128xf32, #tpu.memory_space<vmem>>, vector<8x128xf32>
    tpu.vector_store %arg4[%c0_6, %c0_7], %7 {strides = array<i32>} : memref<8x128xf32, #tpu.memory_space<vmem>>, vector<8x128xf32>,
    return
  }
  func.func @transform_0(%arg0: i32) -> (i32, i32) {
    %c0_i32 = arith.constant 0 : i32
    %c0_i32_0 = arith.constant 0 : i32
    return %arg0, %c0_i32 : i32, i32
  }
  func.func @transform_1(%arg0: i32) -> (i32, i32) {
    %c0_i32 = arith.constant 0 : i32
    %c0_i32_0 = arith.constant 0 : i32
    %c0_i32_1 = arith.constant 0 : i32
    return %c0_i32, %c0_i32_0 : i32, i32
  }
  func.func @transform_2(%arg0: i32) -> (i32, i32) {
    %c0_i32 = arith.constant 0 : i32
    %c0_i32_0 = arith.constant 0 : i32
    %c0_i32_1 = arith.constant 0 : i32
    return %c0_i32, %c0_i32_0 : i32, i32
  }
  func.func @transform_3(%arg0: i32) -> (i32, i32) {
    %c0_i32 = arith.constant 0 : i32
    %c0_i32_0 = arith.constant 0 : i32
    return %arg0, %c0_i32 : i32, i32
  }
}

</mosaic_0001>

<llo_original>
// kernel: expert_forward.1
$region0: #{expert_forward.1}
  #allocation0 [shape = 'u32[]', space=smem, size = 0x4, offset = 0x4, fixed_abs, tag = 'smem constant byte address 0x4 - core index']
  #allocation1 [shape = 'u32[144,128]{1,0:T(1,128)}', space=vmem, size = 0x12000, scoped, tag = 'internal scratch']
  %s0 = inlined_call_operand.vmem [shape: f32[8,128], index: 0, kind: input, shape index: {}]
  %s1 = inlined_call_operand.hbm [shape: f32[128,128], index: 1, kind: input, shape index: {}]
  %s2 = inlined_call_operand.vmem [shape: f32[1,128], index: 2, kind: input, shape index: {}]
  %s3 = inlined_call_operand.hbm [shape: f32[8,128], index: 3, kind: output, shape index: {}]
  %s4 = sld [smem:[#allocation0]]
  $region26: #{expert_forward.1} parent=0
    _
  %s6 = ssub.s32 1, %s4
  %s7 = scalar_select 0, %s6, %s4
  $region1: #{expert_forward.1} parent=0
    #allocation2 [shape = 'u8[65536]{0}', space=vmem, size = 0x10000, scoped, tag = 'input window, operand 1, single buffered']
    #allocation3 [shape = 's32[1]{0}', space=sflag, size = 0x4, scoped, tag = 'scoped memory for expert_forward.1']
    #allocation4 [shape = 's32[1]{0}', space=sflag, size = 0x4, scoped, tag = 'scoped memory for expert_forward.1']
    #allocation5 [shape = 'u8[4096]{0}', space=vmem, size = 0x1000, scoped, tag = 'output window, operand 0, single buffered']
    %8 = vsyncpa [#allocation3], 0
    %9 = vsyncpa [#allocation4], 0
    // Predicated region
    $region2: #{expert_forward.1} parent=1 // pred_check
      _
    $region3: #{expert_forward.1} parent=1 // pred_check_branch
      %11 = sbr.rel (0) target = $region5
    $region4: #{expert_forward.1} parent=1 // pred_region
      _
    $region5: #{expert_forward.1} parent=1 // pred_fallthru
      _
    // Predicated region
    $region6: #{expert_forward.1} parent=1 // pred_check
      _
    $region7: #{expert_forward.1} parent=1 // pred_check_branch
      %13 = sbr.rel (0) target = $region9
    $region8: #{expert_forward.1} parent=1 // pred_region
      %s15 = ssub.s32 2048, 2048
      %16 = vsyncadd [#allocation3], %s15
      %s17 = sshll.u32 [#allocation2], 4
      %s18 = int_to_ptr.vmem [resolvable:$true] %s17
      %23 = dma.hbm_to_vmem [thread:$0]  %s1, 2048, %s18, [#allocation3], 128, 128, 8
    $region9: #{expert_forward.1} parent=1 // pred_fallthru
      _
    // Predicated region
    $region10: #{expert_forward.1} parent=1 // pred_check
      _
    $region11: #{expert_forward.1} parent=1 // pred_check_branch
      %25 = sbr.rel (0) target = $region13
    $region12: #{expert_forward.1} parent=1 // pred_region
      _
    $region13: #{expert_forward.1} parent=1 // pred_fallthru
      _
    // Predicated region
    $region14: #{expert_forward.1} parent=1 // pred_check
      _
    $region15: #{expert_forward.1} parent=1 // pred_check_branch
      %27 = sbr.rel (0) target = $region17
    $region16: #{expert_forward.1} parent=1 // pred_region
      %28 = dma.done [#allocation3], 2048
    $region17: #{expert_forward.1} parent=1 // pred_fallthru
      _
    %v29 = vld [vmem:[%s0] sm:$0xff]
    %v30 = vld [vmem:[#allocation2] sm:$0xff]
    %v31 = vld [vmem:[#allocation2 + $0x8] sm:$0xff]
    %v32 = vld [vmem:[#allocation2 + $0x10] sm:$0xff]
    %v33 = vld [vmem:[#allocation2 + $0x18] sm:$0xff]
    %v34 = vld [vmem:[#allocation2 + $0x20] sm:$0xff]
    %v35 = vld [vmem:[#allocation2 + $0x28] sm:$0xff]
    %v36 = vld [vmem:[#allocation2 + $0x30] sm:$0xff]
    %v37 = vld [vmem:[#allocation2 + $0x38] sm:$0xff]
    %v38 = vld [vmem:[#allocation2 + $0x40] sm:$0xff]
    %v39 = vld [vmem:[#allocation2 + $0x48] sm:$0xff]
    %v40 = vld [vmem:[#allocation2 + $0x50] sm:$0xff]
    %v41 = vld [vmem:[#allocation2 + $0x58] sm:$0xff]
    %v42 = vld [vmem:[#allocation2 + $0x60] sm:$0xff]
    %v43 = vld [vmem:[#allocation2 + $0x68] sm:$0xff]
    %v44 = vld [vmem:[#allocation2 + $0x70] sm:$0xff]
    %v45 = vld [vmem:[#allocation2 + $0x78] sm:$0xff]
    %v46 = vld [vmem:[%s2] sm:$0x1]
    %v48 = vlaneseq
    %v49 = vshrl.u32 %v48, 7
    %v50 = vsub.s32 0, %v49
    %v51 = vrot.slane %v46, %v50
    %53 = vmatprep.subr.mxu0 0.0
    %54 = vmatpush1.msra.mxu0 %v45
    %55 = vmatprep.subr.mxu0 0.0
    %56 = vmatpush1.msra.mxu0 %v44
    %57 = vmatprep.subr.mxu0 0.0
    %58 = vmatpush1.msra.mxu0 %v43
    %59 = vmatprep.subr.mxu0 0.0
    %60 = vmatpush1.msra.mxu0 %v42
    %61 = vmatprep.subr.mxu0 0.0
    %62 = vmatpush1.msra.mxu0 %v41
    %63 = vmatprep.subr.mxu0 0.0
    %64 = vmatpush1.msra.mxu0 %v40
    %65 = vmatprep.subr.mxu0 0.0
    %66 = vmatpush1.msra.mxu0 %v39
    %67 = vmatprep.subr.mxu0 0.0
    %68 = vmatpush1.msra.mxu0 %v38
    %69 = vmatprep.subr.mxu0 0.0
    %70 = vmatpush1.msra.mxu0 %v37
    %71 = vmatprep.subr.mxu0 0.0
    %72 = vmatpush1.msra.mxu0 %v36
    %73 = vmatprep.subr.mxu0 0.0
    %74 = vmatpush1.msra.mxu0 %v35
    %75 = vmatprep.subr.mxu0 0.0
    %76 = vmatpush1.msra.mxu0 %v34
    %77 = vmatprep.subr.mxu0 0.0
    %78 = vmatpush1.msra.mxu0 %v33
    %79 = vmatprep.subr.mxu0 0.0
    %80 = vmatpush1.msra.mxu0 %v32
    %81 = vmatprep.subr.mxu0 0.0
    %82 = vmatpush1.msra.mxu0 %v31
    %83 = vmatprep.subr.mxu0 0.0
    %84 = vmatpush1.msra.mxu0 %v30
    %85 = vmatprep.subr.mxu0 0.0
    %86 = vmatpush2.msra.mxu0 0.0
    %87 = vmatprep.subr.mxu0 0.0
    %88 = vmatpush2.msra.mxu0 0.0
    %89 = vmatprep.subr.mxu0 0.0
    %90 = vmatpush2.msra.mxu0 0.0
    %91 = vmatprep.subr.mxu0 0.0
    %92 = vmatpush2.msra.mxu0 0.0
    %93 = vmatprep.subr.mxu0 0.0
    %94 = vmatpush2.msra.mxu0 0.0
    %95 = vmatprep.subr.mxu0 0.0
    %96 = vmatpush2.msra.mxu0 0.0
    %97 = vmatprep.subr.mxu0 0.0
    %98 = vmatpush2.msra.mxu0 0.0
    %99 = vmatprep.subr.mxu0 0.0
    %100 = vmatpush2.msra.mxu0 0.0
    %101 = vmatprep.subr.mxu0 0.0
    %102 = vmatpush2.msra.mxu0 0.0
    %103 = vmatprep.subr.mxu0 0.0
    %104 = vmatpush2.msra.mxu0 0.0
    %105 = vmatprep.subr.mxu0 0.0
    %106 = vmatpush2.msra.mxu0 0.0
    %107 = vmatprep.subr.mxu0 0.0
    %108 = vmatpush2.msra.mxu0 0.0
    %109 = vmatprep.subr.mxu0 0.0
    %110 = vmatpush2.msra.mxu0 0.0
    %111 = vmatprep.subr.mxu0 0.0
    %112 = vmatpush2.msra.mxu0 0.0
    %113 = vmatprep.subr.mxu0 0.0
    %114 = vmatpush2.msra.mxu0 0.0
    %115 = vmatprep.subr.mxu0 0.0
    %116 = vmatpush2.msra.mxu0 0.0
    %117 = vmatprep.mubr.f32.mxu0 0.0
    %118 = vmatmul.mubr.f32.gmra.mxu0 %v29
    %v119 = vpop.f32.mrf.mxu0
    %v120 = vadd.f32 %v51, %v119
    %v121 = vpop.f32.mrf.mxu0
    %122 = vdwg.mxu0
    %v123 = vmax.f32 %v120, 0.0
    %124 = vst [vmem:[#allocation5] sm:$0xff] %v123
    // Predicated region
    $region18: #{expert_forward.1} parent=1 // pred_check
      _
    $region19: #{expert_forward.1} parent=1 // pred_check_branch
      %126 = sbr.rel (0) target = $region21
    $region20: #{expert_forward.1} parent=1 // pred_region
      %s128 = ssub.s32 128, 128
      %129 = vsyncadd [#allocation4], %s128
      %s131 = sshll.u32 [#allocation5], 4
      %s132 = int_to_ptr.vmem [resolvable:$true] %s131
      %134 = dma.vmem_to_hbm [thread:$0]  %s132, 128, %s3, [#allocation4]
    $region21: #{expert_forward.1} parent=1 // pred_fallthru
      _
    // Predicated region
    $region22: #{expert_forward.1} parent=1 // pred_check
      _
    $region23: #{expert_forward.1} parent=1 // pred_check_branch
      %136 = sbr.rel (0) target = $region25
    $region24: #{expert_forward.1} parent=1 // pred_region
      %137 = dma.done [#allocation4], 128
    $region25: #{expert_forward.1} parent=1 // pred_fallthru
      _
    %138 = vsyncpa [#allocation3], 1
    %139 = vsyncpa [#allocation4], 1

</llo_original>
